<compile_context>
chip_gen: v5e
topology: v5e:2x2
jax: 0.10.0
libtpu: 0.0.40
codegen_flags: <defaults>
</compile_context>

<pallas_src>
import functools

import jax
import jax.numpy as jnp
from jax.experimental import pallas as pl
from jax.experimental.pallas import tpu as pltpu

EPS = 1e-5
_MIB = 1024 * 1024


def _round_up(x, m):
    return ((x + m - 1) // m) * m


def _sublane(dtype):
    return {4: 8, 2: 16, 1: 32}.get(jnp.dtype(dtype).itemsize, 8)


def _choose_row_tile(rows, lane_width, dtype_bytes, sublane, target_bytes,
                     max_tr=4096):
    """Row tile: multiple of `sublane`, block ~target_bytes, and (when rows
    allow) >= 2 grid steps along the parallel row axis (v7x megacore).
    Prefers a divisor of `rows` so there is no row padding / boundary block."""
    rows8 = _round_up(rows, sublane)
    cap = (target_bytes // max(1, lane_width * dtype_bytes)) // sublane * sublane
    cap = max(sublane, cap)
    cap = min(cap, max_tr)
    # keep at least 2 steps on the parallel row axis when possible (2 TCs on v7x)
    cap = min(cap, max(sublane, _round_up(-(-rows // 2), sublane)))
    cap = min(cap, rows8)
    if rows % sublane == 0:
        for d in range(cap, 0, -sublane):
            if rows % d == 0:
                return d
    return cap


# --------------------------------------------------------------------------
# Path 1: full spatial row resident in VMEM (the common case).
# --------------------------------------------------------------------------
def _adain_rows_kernel(gb_ref, x_ref, o_ref, *, inv_hw):
    # gb_ref: (TR, 2) = [1 + gamma, beta];  x_ref / o_ref: (TR, HW)
    x = x_ref[...].astype(jnp.float32)
    # Two-pass statistics: the tile is VMEM-resident so the extra VPU pass is
    # hidden under the HBM bound, and numerics are sound (no clamp needed).
    mean = jnp.sum(x, axis=-1, keepdims=True) * inv_hw
    xc = x - mean
    var = jnp.sum(xc * xc, axis=-1, keepdims=True) * inv_hw
    scale = gb_ref[:, 0:1].astype(jnp.float32) * jax.lax.rsqrt(var + EPS)
    beta = gb_ref[:, 1:2].astype(jnp.float32)
    o_ref[...] = (xc * scale + beta).astype(o_ref.dtype)


# --------------------------------------------------------------------------
# Path 2: lane-tiled two-call path for very large H*W (keeps blocks a few MiB).
# --------------------------------------------------------------------------
def _adain_stats_kernel(gb_ref, x_ref, scale_ref, shift_ref, s1_ref, s2_ref,
                        *, hw, lane_tile):
    j = pl.program_id(1)

    @pl.when(j == 0)
    def _():
        s1_ref[...] = jnp.zeros_like(s1_ref)
        s2_ref[...] = jnp.zeros_like(s2_ref)

    x = x_ref[...].astype(jnp.float32)
    # Mask the (possibly out-of-bounds) lane tail of the last lane tile.
    col = jax.lax.broadcasted_iota(jnp.int32, x.shape, 1) + j * lane_tile
    x = jnp.where(col < hw, x, 0.0)
    s1_ref[...] += jnp.sum(x, axis=-1, keepdims=True)
    s2_ref[...] += jnp.sum(x * x, axis=-1, keepdims=True)

    @pl.when(j == pl.num_programs(1) - 1)
    def _():
        inv_hw = 1.0 / hw
        mean = s1_ref[...] * inv_hw
        var = jnp.maximum(s2_ref[...] * inv_hw - mean * mean, 0.0)
        scale = gb_ref[:, 0:1].astype(jnp.float32) * jax.lax.rsqrt(var + EPS)
        scale_ref[...] = scale
        shift_ref[...] = gb_ref[:, 1:2].astype(jnp.float32) - scale * mean


def _adain_apply_kernel(scale_ref, shift_ref, x_ref, o_ref):
    x = x_ref[...].astype(jnp.float32)
    o_ref[...] = (x * scale_ref[...] + shift_ref[...]).astype(o_ref.dtype)


# --------------------------------------------------------------------------
# Wrapper.
# --------------------------------------------------------------------------
def adain(x, s, fc_weight, fc_bias, *,
          target_block_bytes=4 * _MIB,
          max_single_block_bytes=6 * _MIB,
          lane_tile=2048,
          vmem_limit_bytes=40 * _MIB):
    """x: (B, C, H, W); s: (B, S); fc_weight: (2C, S); fc_bias: (2C,)."""
    B, C, H, W = x.shape
    HW = H * W
    rows = B * C
    dtype_bytes = jnp.dtype(x.dtype).itemsize
    sublane = _sublane(x.dtype)

    # Tiny style FC hoisted out of the kernel (done in f32).
    h = (s.astype(jnp.float32) @ fc_weight.T.astype(jnp.float32)
         + fc_bias.astype(jnp.float32))                       # (B, 2C)
    gb = jnp.stack([1.0 + h[:, :C], h[:, C:]], axis=-1).reshape(rows, 2)

    x_flat = x.reshape(rows, HW)   # free reshape; no pad, no extra HBM traffic

    if sublane * HW * dtype_bytes <= max_single_block_bytes:
        # ---- single-pass path: a full spatial row fits in a VMEM tile ----
        tr = _choose_row_tile(rows, HW, dtype_bytes, sublane, target_block_bytes)
        grid = (pl.cdiv(rows, tr),)
        out_flat = pl.pallas_call(
            functools.partial(_adain_rows_kernel, inv_hw=1.0 / HW),
            out_shape=jax.ShapeDtypeStruct((rows, HW), x.dtype),
            grid_spec=pltpu.PrefetchScalarGridSpec(
                num_scalar_prefetch=0,
                grid=grid,
                in_specs=[
                    pl.BlockSpec((tr, 2), lambda i: (i, 0)),     # [1+gamma, beta]
                    pl.BlockSpec((tr, HW), lambda i: (i, 0)),    # x row tile
                ],
                out_specs=pl.BlockSpec((tr, HW), lambda i: (i, 0)),
            ),
            compiler_params=pltpu.CompilerParams(
                dimension_semantics=("parallel",),
                vmem_limit_bytes=vmem_limit_bytes,
            ),
        )(gb, x_flat)
    else:
        # ---- lane-tiled path for large H*W: stats pass then apply pass ----
        tl = min(lane_tile, _round_up(HW, 128))
        tr = _choose_row_tile(rows, tl, dtype_bytes, sublane, target_block_bytes)
        row_tiles = pl.cdiv(rows, tr)
        lane_tiles = pl.cdiv(HW, tl)

        scale, shift = pl.pallas_call(
            functools.partial(_adain_stats_kernel, hw=HW, lane_tile=tl),
            out_shape=(jax.ShapeDtypeStruct((rows, 1), jnp.float32),
                       jax.ShapeDtypeStruct((rows, 1), jnp.float32)),
            grid_spec=pltpu.PrefetchScalarGridSpec(
                num_scalar_prefetch=0,
                grid=(row_tiles, lane_tiles),
                in_specs=[
                    pl.BlockSpec((tr, 2), lambda i, j: (i, 0)),
                    pl.BlockSpec((tr, tl), lambda i, j: (i, j)),
                ],
                out_specs=(pl.BlockSpec((tr, 1), lambda i, j: (i, 0)),
                           pl.BlockSpec((tr, 1), lambda i, j: (i, 0))),
                scratch_shapes=[pltpu.VMEM((tr, 1), jnp.float32),
                                pltpu.VMEM((tr, 1), jnp.float32)],
            ),
            compiler_params=pltpu.CompilerParams(
                dimension_semantics=("parallel", "arbitrary"),
                vmem_limit_bytes=vmem_limit_bytes,
            ),
        )(gb, x_flat)

        out_flat = pl.pallas_call(
            _adain_apply_kernel,
            out_shape=jax.ShapeDtypeStruct((rows, HW), x.dtype),
            grid_spec=pltpu.PrefetchScalarGridSpec(
                num_scalar_prefetch=0,
                grid=(row_tiles, lane_tiles),
                in_specs=[
                    pl.BlockSpec((tr, 1), lambda i, j: (i, 0)),
                    pl.BlockSpec((tr, 1), lambda i, j: (i, 0)),
                    pl.BlockSpec((tr, tl), lambda i, j: (i, j)),
                ],
                out_specs=pl.BlockSpec((tr, tl), lambda i, j: (i, j)),
            ),
            compiler_params=pltpu.CompilerParams(
                dimension_semantics=("parallel", "parallel"),
                vmem_limit_bytes=vmem_limit_bytes,
            ),
        )(scale, shift, x_flat)

    return out_flat.reshape(B, C, H, W)


def adain_reference(x, s, fc_weight, fc_bias):
    """Pure-JAX reference matching the PyTorch forward."""
    B, C, H, W = x.shape
    h = s @ fc_weight.T + fc_bias                    # (B, 2C)
    gamma = h[:, :C].reshape(B, C, 1, 1)
    beta = h[:, C:].reshape(B, C, 1, 1)
    mean = jnp.mean(x, axis=(2, 3), keepdims=True)
    var = jnp.mean((x - mean) ** 2, axis=(2, 3), keepdims=True)
    xn = (x - mean) * jax.lax.rsqrt(var + EPS)
    return (1.0 + gamma) * xn + beta


if __name__ == "__main__":
    # Small shapes consistent with the module's forward.
    B, C, H, W = 2, 4, 16, 16
    style_dim = 8

    key = jax.random.PRNGKey(0)
    kx, ks, kw, kb = jax.random.split(key, 4)

    x = jax.random.normal(kx, (B, C, H, W), dtype=jnp.float32)
    s = jax.random.normal(ks, (B, style_dim), dtype=jnp.float32)
    # PyTorch Linear weight shape: (2C, style_dim).
    fc_weight = jax.random.normal(kw, (2 * C, style_dim), dtype=jnp.float32) * 0.1
    fc_bias = jax.random.normal(kb, (2 * C,), dtype=jnp.float32) * 0.1

    ref = adain_reference(x, s, fc_weight, fc_bias)

    # Main (single-pass, row-tiled) path.
    out = jax.block_until_ready(adain(x, s, fc_weight, fc_bias))
    assert out.shape == (B, C, H, W)
    assert jnp.allclose(out, ref, atol=1e-4, rtol=1e-4), "mismatch (row path)"

    # Exercise the lane-tiled large-H*W path at small shapes by forcing it.
    out2 = jax.block_until_ready(
        adain(x, s, fc_weight, fc_bias, max_single_block_bytes=1, lane_tile=128))
    assert jnp.allclose(out2, ref, atol=1e-4, rtol=1e-4), "mismatch (lane path)"

    print("KERNEL_OK")
</pallas_src>

<mosaic_0001>
module attributes {stable_mosaic.version = 11 : i64} {
  func.func @_adain_rows_kernel(%arg0: i32, %arg1: memref<8x2xf32, #tpu.memory_space<vmem>>, %arg2: memref<8x256xf32, #tpu.memory_space<vmem>>, %arg3: memref<8x256xf32, #tpu.memory_space<vmem>>) attributes {dimension_semantics = [#tpu.dimension_semantics<parallel>], iteration_bounds = array<i64: 1>, scalar_prefetch = 0 : i64, scratch_operands = 0 : i64, tpu.core_type = #tpu.core_type<tc>, window_params = [{transform_indices = @transform_0, window_bounds = array<i64: 8, 2>}, {transform_indices = @transform_1, window_bounds = array<i64: 8, 256>}, {transform_indices = @transform_2, window_bounds = array<i64: 8, 256>}]} {
    %c0 = arith.constant 0 : index
    %c0_0 = arith.constant 0 : index
    %0 = vector.load %arg2[%c0, %c0_0] : memref<8x256xf32, #tpu.memory_space<vmem>>, vector<8x256xf32>
    %cst = arith.constant dense<0.000000e+00> : vector<8xf32>
    %1 = vector.multi_reduction <add>, %0, %cst [1] : vector<8x256xf32> to vector<8xf32>
    %2 = vector.shape_cast %1 : vector<8xf32> to vector<8x1xf32>
    %cst_1 = arith.constant 3.906250e-03 : f32
    %3 = vector.broadcast %cst_1 : f32 to vector<8x1xf32>
    %4 = arith.mulf %2, %3 : vector<8x1xf32>
    %5 = vector.broadcast %4 : vector<8x1xf32> to vector<8x256xf32>
    %6 = arith.subf %0, %5 : vector<8x256xf32>
    %7 = arith.mulf %6, %6 : vector<8x256xf32>
    %cst_2 = arith.constant dense<0.000000e+00> : vector<8xf32>
    %8 = vector.multi_reduction <add>, %7, %cst_2 [1] : vector<8x256xf32> to vector<8xf32>
    %9 = vector.shape_cast %8 : vector<8xf32> to vector<8x1xf32>
    %cst_3 = arith.constant 3.906250e-03 : f32
    %10 = vector.broadcast %cst_3 : f32 to vector<8x1xf32>
    %11 = arith.mulf %9, %10 : vector<8x1xf32>
    %c0_4 = arith.constant 0 : index
    %c0_5 = arith.constant 0 : index
    %12 = vector.load %arg1[%c0_4, %c0_5] : memref<8x2xf32, #tpu.memory_space<vmem>>, vector<8x1xf32>
    %cst_6 = arith.constant 9.99999974E-6 : f32
    %13 = vector.broadcast %cst_6 : f32 to vector<8x1xf32>
    %14 = arith.addf %11, %13 : vector<8x1xf32>
    %15 = math.rsqrt %14 : vector<8x1xf32>
    %16 = arith.mulf %12, %15 : vector<8x1xf32>
    %c0_7 = arith.constant 0 : index
    %c1 = arith.constant 1 : index
    %17 = vector.load %arg1[%c0_7, %c1] : memref<8x2xf32, #tpu.memory_space<vmem>>, vector<8x1xf32>
    %18 = vector.broadcast %16 : vector<8x1xf32> to vector<8x256xf32>
    %19 = arith.mulf %6, %18 : vector<8x256xf32>
    %20 = vector.broadcast %17 : vector<8x1xf32> to vector<8x256xf32>
    %21 = arith.addf %19, %20 : vector<8x256xf32>
    %c0_8 = arith.constant 0 : index
    %c0_9 = arith.constant 0 : index
    %22 = vector.load %arg3[%c0_8, %c0_9] : memref<8x256xf32, #tpu.memory_space<vmem>>, vector<8x256xf32>
    tpu.vector_store %arg3[%c0_8, %c0_9], %21 {strides = array<i32>} : memref<8x256xf32, #tpu.memory_space<vmem>>, vector<8x256xf32>,
    return
  }
  func.func @transform_0(%arg0: i32) -> (i32, i32) {
    %c0_i32 = arith.constant 0 : i32
    %c0_i32_0 = arith.constant 0 : i32
    return %arg0, %c0_i32 : i32, i32
  }
  func.func @transform_1(%arg0: i32) -> (i32, i32) {
    %c0_i32 = arith.constant 0 : i32
    %c0_i32_0 = arith.constant 0 : i32
    return %arg0, %c0_i32 : i32, i32
  }
  func.func @transform_2(%arg0: i32) -> (i32, i32) {
    %c0_i32 = arith.constant 0 : i32
    %c0_i32_0 = arith.constant 0 : i32
    return %arg0, %c0_i32 : i32, i32
  }
}

</mosaic_0001>

<llo_original>
// kernel: tpu_custom_call.1
$region0: #{tpu_custom_call.1}
  #allocation0 [shape = 'u32[]', space=smem, size = 0x4, offset = 0x4, fixed_abs, tag = 'smem constant byte address 0x4 - core index']
  #allocation1 [shape = 'u32[72,128]{1,0:T(1,128)}', space=vmem, size = 0x9000, scoped, tag = 'internal scratch']
  %s0 = inlined_call_operand.vmem [shape: f32[8,2], index: 0, kind: input, shape index: {}]
  %s1 = inlined_call_operand.hbm [shape: f32[8,256], index: 1, kind: input, shape index: {}]
  %s2 = inlined_call_operand.hbm [shape: f32[8,256], index: 2, kind: output, shape index: {}]
  %s3 = sld [smem:[#allocation0]]
  $region22: #{tpu_custom_call.1} parent=0
    _
  %s5 = ssub.s32 1, %s3
  %s6 = scalar_select 0, %s5, %s3
  $region1: #{tpu_custom_call.1} parent=0
    #allocation2 [shape = 'u8[8192]{0}', space=vmem, size = 0x2000, scoped, tag = 'input window, operand 1, single buffered']
    #allocation3 [shape = 's32[1]{0}', space=sflag, size = 0x4, scoped, tag = 'scoped memory for tpu_custom_call.1']
    #allocation4 [shape = 's32[1]{0}', space=sflag, size = 0x4, scoped, tag = 'scoped memory for tpu_custom_call.1']
    #allocation5 [shape = 'u8[8192]{0}', space=vmem, size = 0x2000, scoped, tag = 'output window, operand 0, single buffered']
    %7 = vsyncpa [#allocation3], 0
    %8 = vsyncpa [#allocation4], 0
    // Predicated region
    $region2: #{tpu_custom_call.1} parent=1 // pred_check
      _
    $region3: #{tpu_custom_call.1} parent=1 // pred_check_branch
      %10 = sbr.rel (0) target = $region5
    $region4: #{tpu_custom_call.1} parent=1 // pred_region
      _
    $region5: #{tpu_custom_call.1} parent=1 // pred_fallthru
      _
    // Predicated region
    $region6: #{tpu_custom_call.1} parent=1 // pred_check
      _
    $region7: #{tpu_custom_call.1} parent=1 // pred_check_branch
      %12 = sbr.rel (0) target = $region9
    $region8: #{tpu_custom_call.1} parent=1 // pred_region
      %14 = vsyncadd [#allocation3], 0
      %s16 = sshll.u32 %s1, 4
      %s17 = int_to_ptr.hbm [resolvable:$true] %s16
      %s18 = sshll.u32 [#allocation2], 4
      %s19 = int_to_ptr.vmem [resolvable:$true] %s18
      %21 = dma.hbm_to_vmem [thread:$0]  %s17, 256, %s19, [#allocation3]
    $region9: #{tpu_custom_call.1} parent=1 // pred_fallthru
      _
    // Predicated region
    $region10: #{tpu_custom_call.1} parent=1 // pred_check
      _
    $region11: #{tpu_custom_call.1} parent=1 // pred_check_branch
      %23 = sbr.rel (0) target = $region13
    $region12: #{tpu_custom_call.1} parent=1 // pred_region
      %25 = dma.done [#allocation3], 256
    $region13: #{tpu_custom_call.1} parent=1 // pred_fallthru
      _
    %v26 = vld [vmem:[#allocation2] sm:$0xff]
    %v27 = vld [vmem:[#allocation2 + $0x8] sm:$0xff]
    %v28 = vadd.f32 %v26, %v27
    %29 = vadd.xlane.f32.xlu0 %v28
    %v30 = vpop.xlane.xlu0 %29
    %v31 = vmul.f32 %v30, 0.00390625
    %v32 = vsub.f32 %v26, %v31
    %v33 = vsub.f32 %v27, %v31
    %v34 = vmul.f32 %v32, %v32
    %v35 = vmul.f32 %v33, %v33
    %v36 = vadd.f32 %v34, %v35
    %37 = vadd.xlane.f32.xlu0 %v36
    %v38 = vpop.xlane.xlu0 %37
    %v39 = vmul.f32 %v38, 0.00390625
    %v40 = vld [vmem:[%s0] sm:$0xff]
    %v41 = vadd.f32 %v39, 1e-05
    %v42 = vrsqrt.pop %v41
    %v43 = vmul.f32 %v42, %v41
    %v44 = vmul.f32 %v43, %v42
    %v45 = vmul.f32 0.5, %v44
    %v46 = vsub.f32 1.5, %v45
    %v47 = vmul.f32 %v42, %v46
    %vm48 = vweird.f32 %v41
    %vm49 = vweird.f32 %v42
    %vm50 = vmor %vm48, %vm49
    %v51 = vsel %vm50, %v42, %v47
    %v52 = vmul.f32 %v40, %v51
    %54 = vset.pattern.permute.xlu0 0
    %55 = vperm.xlu0 %54, %v52
    %v56 = vpop.permute.xlu0 %55
    %v58 = vmul.f32 %v32, %v56
    %v59 = vmul.f32 %v33, %v56
    %61 = vset.pattern.permute.xlu0 1
    %62 = vperm.xlu0 %61, %v40
    %v63 = vpop.permute.xlu0 %62
    %v65 = vadd.f32 %v58, %v63
    %v66 = vadd.f32 %v59, %v63
    %67 = vst [vmem:[#allocation5] sm:$0xff] %v65
    %68 = vst [vmem:[#allocation5 + $0x8] sm:$0xff] %v66
    // Predicated region
    $region14: #{tpu_custom_call.1} parent=1 // pred_check
      _
    $region15: #{tpu_custom_call.1} parent=1 // pred_check_branch
      %70 = sbr.rel (0) target = $region17
    $region16: #{tpu_custom_call.1} parent=1 // pred_region
      %72 = vsyncadd [#allocation4], 0
      %s74 = sshll.u32 [#allocation5], 4
      %s75 = int_to_ptr.vmem [resolvable:$true] %s74
      %s76 = sshll.u32 %s2, 4
      %s77 = int_to_ptr.hbm [resolvable:$true] %s76
      %79 = dma.vmem_to_hbm [thread:$0]  %s75, 256, %s77, [#allocation4]
    $region17: #{tpu_custom_call.1} parent=1 // pred_fallthru
      _
    // Predicated region
    $region18: #{tpu_custom_call.1} parent=1 // pred_check
      _
    $region19: #{tpu_custom_call.1} parent=1 // pred_check_branch
      %81 = sbr.rel (0) target = $region21
    $region20: #{tpu_custom_call.1} parent=1 // pred_region
      %83 = dma.done [#allocation4], 256
    $region21: #{tpu_custom_call.1} parent=1 // pred_fallthru
      _
    %84 = vsyncpa [#allocation3], 1
    %85 = vsyncpa [#allocation4], 1

</llo_original>
